<compile_context>
chip_gen: v7x
topology: tpu7x:2x2x1
jax: 0.10.0
libtpu: 0.0.40
codegen_flags: <defaults>
</compile_context>

<pallas_src>
import functools

import jax
import jax.numpy as jnp
from jax import lax
from jax.experimental import pallas as pl
from jax.experimental.pallas import tpu as pltpu


EPS = 1e-5


def _round_up(x, m):
    return ((x + m - 1) // m) * m


def _fc1_norm_relu(x_ref, w1_ref, b1_ref, *, inv_hidden, n_pad, mxu_dtype):
    # fc1: (TB, D_pad) @ (D_pad, H_pad) + (1, H_pad); MXU operands in mxu_dtype,
    # f32 accumulation. Padded columns of h are exactly 0 (zero-padded w1 cols / b1).
    h = jnp.dot(x_ref[...], w1_ref[...], preferred_element_type=jnp.float32) + b1_ref[...]

    # InstanceNorm1d over the valid H columns (biased variance, eps=1e-5, no affine).
    #   sum(h) over all H_pad columns == sum over the valid columns (pads are 0)
    #   centered[padded col] == -mean exactly -> subtract n_pad * mean^2 analytically.
    mean = jnp.sum(h, axis=-1, keepdims=True) * inv_hidden
    centered = h - mean
    sq = jnp.sum(centered * centered, axis=-1, keepdims=True)
    var = (sq - n_pad * (mean * mean)) * inv_hidden
    a = jnp.maximum(centered * lax.rsqrt(var + EPS), 0.0)
    # Padded columns of `a` are garbage, but the matching rows of the next weight are 0.
    return a.astype(mxu_dtype)


def expert_kernel_fused(x_ref, w1_ref, b1_ref, w2m_ref, b2m_ref, o_ref, *,
                        inv_hidden, n_pad, mxu_dtype):
    a = _fc1_norm_relu(x_ref, w1_ref, b1_ref,
                       inv_hidden=inv_hidden, n_pad=n_pad, mxu_dtype=mxu_dtype)
    # Fused fc2 + mapper: (TB, H_pad) @ (H_pad, P_pad) + (1, P_pad).
    y = jnp.dot(a, w2m_ref[...], preferred_element_type=jnp.float32) + b2m_ref[...]
    o_ref[...] = y.astype(o_ref.dtype)


def expert_kernel_unfused(x_ref, w1_ref, b1_ref, w2_ref, b2_ref, wm_ref, o_ref, *,
                          inv_hidden, n_pad, mxu_dtype):
    a = _fc1_norm_relu(x_ref, w1_ref, b1_ref,
                       inv_hidden=inv_hidden, n_pad=n_pad, mxu_dtype=mxu_dtype)
    z = jnp.dot(a, w2_ref[...], preferred_element_type=jnp.float32) + b2_ref[...]
    y = jnp.dot(z.astype(mxu_dtype), wm_ref[...], preferred_element_type=jnp.float32)
    o_ref[...] = y.astype(o_ref.dtype)


def prepare_expert_params(w1, b1, w2, b2, wm, *, use_bf16=True):
    """One-time parameter prep (hoisted out of the per-call path): lane-dense zero
    padding, optional bf16 cast of MXU operands, and the conditional fc2*mapper fusion.
    Weights are in (in, out) layout; biases are (1, out)."""
    D, H = w1.shape
    O = w2.shape[1]
    P = wm.shape[1]
    D_pad, H_pad = _round_up(D, 128), _round_up(H, 128)
    O_pad, P_pad = _round_up(O, 128), _round_up(P, 128)
    mxu_dtype = jnp.bfloat16 if use_bf16 else jnp.float32

    w1_p = jnp.pad(w1, ((0, D_pad - D), (0, H_pad - H))).astype(mxu_dtype)
    b1_p = jnp.pad(b1, ((0, 0), (0, H_pad - H)))                      # stays f32

    # Fuse fc2 and the bias-free mapper only when it does not grow the resident weight.
    fused = P_pad <= O_pad
    if fused:
        w2m = w2 @ wm                                                 # (H, P) f32
        b2m = b2 @ wm                                                 # (1, P) f32
        tail = (
            jnp.pad(w2m, ((0, H_pad - H), (0, P_pad - P))).astype(mxu_dtype),
            jnp.pad(b2m, ((0, 0), (0, P_pad - P))),                   # f32
        )
    else:
        tail = (
            jnp.pad(w2, ((0, H_pad - H), (0, O_pad - O))).astype(mxu_dtype),
            jnp.pad(b2, ((0, 0), (0, O_pad - O))),                    # f32
            jnp.pad(wm, ((0, O_pad - O), (0, P_pad - P))).astype(mxu_dtype),
        )

    return dict(
        fused=fused, mxu_dtype=mxu_dtype,
        D=D, H=H, P=P,
        D_pad=D_pad, H_pad=H_pad, O_pad=O_pad, P_pad=P_pad,
        weights=(w1_p, b1_p) + tail,
    )


def expert_forward(x, params, *, batch_tile=256):
    """x: (B, D) f32. params: output of prepare_expert_params."""
    B, D = x.shape
    assert D == params["D"], "input feature size mismatch"
    D_pad, H_pad, O_pad, P_pad = (params[k] for k in ("D_pad", "H_pad", "O_pad", "P_pad"))
    H, P = params["H"], params["P"]
    mxu_dtype = params["mxu_dtype"]
    fused = params["fused"]
    weights = params["weights"]

    # Batch tiling: sublane-aligned, >=2 grid steps when there is enough work (so the
    # "parallel" axis shards across both v7x TensorCores), and TB chosen so the padded
    # tail tile stays small (avoid e.g. B=264 -> B_pad=512).
    B8 = _round_up(B, 8)
    n_steps = pl.cdiv(B8, batch_tile)
    if B8 >= 16:
        n_steps = max(n_steps, 2)
    TB = _round_up(pl.cdiv(B8, n_steps), 8)
    B_pad = _round_up(B8, TB)
    grid = (B_pad // TB,)

    x_p = jnp.pad(x.astype(mxu_dtype), ((0, B_pad - B), (0, D_pad - D)))

    # VMEM budget: double-buffered x/out tiles + single-buffered resident weights
    # + f32 InstanceNorm temps (+ fc2 intermediate on the unfused path).
    itemsize = jnp.dtype(mxu_dtype).itemsize
    w_bytes = sum(int(w.size) * w.dtype.itemsize for w in weights)
    est = (2 * TB * D_pad * itemsize
           + 2 * TB * P_pad * 4
           + w_bytes
           + 4 * TB * H_pad * 4
           + (0 if fused else TB * O_pad * 4))
    vmem_limit = int(min(max(est * 5 // 4, 32 << 20), 64 << 20))

    def resident(shape):
        # Constant index_map -> weights are DMA'd once; Buffered(1) avoids allocating
        # a useless second VMEM copy.
        return pl.BlockSpec(shape, lambda i: (0, 0), pipeline_mode=pl.Buffered(1))

    if fused:
        kernel = functools.partial(expert_kernel_fused, inv_hidden=1.0 / H,
                                   n_pad=H_pad - H, mxu_dtype=mxu_dtype)
        w_specs = [resident((D_pad, H_pad)), resident((1, H_pad)),
                   resident((H_pad, P_pad)), resident((1, P_pad))]
    else:
        kernel = functools.partial(expert_kernel_unfused, inv_hidden=1.0 / H,
                                   n_pad=H_pad - H, mxu_dtype=mxu_dtype)
        w_specs = [resident((D_pad, H_pad)), resident((1, H_pad)),
                   resident((H_pad, O_pad)), resident((1, O_pad)),
                   resident((O_pad, P_pad))]

    out = pl.pallas_call(
        kernel,
        out_shape=jax.ShapeDtypeStruct((B_pad, P_pad), jnp.float32),
        grid=grid,
        in_specs=[pl.BlockSpec((TB, D_pad), lambda i: (i, 0))] + w_specs,
        out_specs=pl.BlockSpec((TB, P_pad), lambda i: (i, 0)),
        compiler_params=pltpu.CompilerParams(
            dimension_semantics=("parallel",),       # megacore-shardable batch axis
            vmem_limit_bytes=vmem_limit,
        ),
    )(x_p, *weights)

    return out[:B, :P]


def xavier_uniform(key, shape_out_in):
    fan_out, fan_in = shape_out_in
    bound = (6.0 / (fan_in + fan_out)) ** 0.5
    return jax.random.uniform(key, shape_out_in, jnp.float32, -bound, bound)


def init_expert_params(key, input_size, hidden_size, output_size, projected_output_size):
    k1, k2, k3, kb1, kb2 = jax.random.split(key, 5)
    # PyTorch Linear stores weight as (out, in); init like the module then transpose.
    w1 = xavier_uniform(k1, (hidden_size, input_size))           # xavier_uniform_
    w2 = xavier_uniform(k2, (output_size, hidden_size))          # xavier_uniform_
    bound_m = 1.0 / (output_size ** 0.5)
    wm = jax.random.uniform(k3, (projected_output_size, output_size), jnp.float32,
                            -bound_m, bound_m)
    bound1 = 1.0 / (input_size ** 0.5)
    b1 = jax.random.uniform(kb1, (1, hidden_size), jnp.float32, -bound1, bound1)
    bound2 = 1.0 / (hidden_size ** 0.5)
    b2 = jax.random.uniform(kb2, (1, output_size), jnp.float32, -bound2, bound2)
    # Transpose weights to (in, out) for row-major matmul in the kernel.
    return w1.T, b1, w2.T, b2, wm.T


def expert_ref(x, w1, b1, w2, b2, wm):
    h = x @ w1 + b1
    mean = jnp.mean(h, axis=-1, keepdims=True)
    var = jnp.mean((h - mean) ** 2, axis=-1, keepdims=True)
    a = jnp.maximum((h - mean) / jnp.sqrt(var + EPS), 0.0)
    return (a @ w2 + b2) @ wm


if __name__ == "__main__":
    # Small shapes consistent with the module's forward semantics (non-multiple batch
    # exercises the pad/slice path and the >=2-grid-step tiling).
    batch, input_size, hidden_size = 10, 32, 20
    output_size, projected_output_size = 2, 2

    key = jax.random.PRNGKey(0)
    kx, kp = jax.random.split(key)
    x = jax.random.normal(kx, (batch, input_size), jnp.float32)
    w1, b1, w2, b2, wm = init_expert_params(
        kp, input_size, hidden_size, output_size, projected_output_size
    )

    ref = expert_ref(x, w1, b1, w2, b2, wm)

    # Exact-path check: f32 MXU operands, tight tolerance against the pure-JAX reference.
    params_f32 = prepare_expert_params(w1, b1, w2, b2, wm, use_bf16=False)
    out_f32 = jax.block_until_ready(expert_forward(x, params_f32))
    assert out_f32.shape == (batch, projected_output_size)
    assert jnp.allclose(out_f32, ref, atol=1e-4, rtol=1e-4), "f32 path mismatch"

    # Default fast path: bf16 MXU operands with f32 accumulation / f32 norm statistics.
    params = prepare_expert_params(w1, b1, w2, b2, wm, use_bf16=True)
    out = jax.block_until_ready(expert_forward(x, params))
    assert out.shape == (batch, projected_output_size)
    assert jnp.allclose(out, ref, atol=1e-1, rtol=1e-1), "bf16 path mismatch"

    print("KERNEL_OK")
</pallas_src>

<mosaic_0001>
module attributes {stable_mosaic.version = 11 : i64} {
  func.func @expert_kernel_fused(%arg0: i32, %arg1: memref<8x128xf32, #tpu.memory_space<vmem>>, %arg2: memref<128x128xf32, #tpu.memory_space<vmem>>, %arg3: memref<1x128xf32, #tpu.memory_space<vmem>>, %arg4: memref<128x128xf32, #tpu.memory_space<vmem>>, %arg5: memref<1x128xf32, #tpu.memory_space<vmem>>, %arg6: memref<8x128xf32, #tpu.memory_space<vmem>>) attributes {dimension_semantics = [#tpu.dimension_semantics<parallel>], iteration_bounds = array<i64: 2>, scalar_prefetch = 0 : i64, scratch_operands = 0 : i64, tpu.core_type = #tpu.core_type<tc>, window_params = [{transform_indices = @transform_0, window_bounds = array<i64: 8, 128>}, {pipeline_mode = #tpu.pipeline_mode<synchronous>, transform_indices = @transform_1, window_bounds = array<i64: 128, 128>}, {pipeline_mode = #tpu.pipeline_mode<synchronous>, transform_indices = @transform_2, window_bounds = array<i64: 1, 128>}, {pipeline_mode = #tpu.pipeline_mode<synchronous>, transform_indices = @transform_3, window_bounds = array<i64: 128, 128>}, {pipeline_mode = #tpu.pipeline_mode<synchronous>, transform_indices = @transform_4, window_bounds = array<i64: 1, 128>}, {transform_indices = @transform_5, window_bounds = array<i64: 8, 128>}]} {
    %c0 = arith.constant 0 : index
    %c0_0 = arith.constant 0 : index
    %0 = vector.load %arg1[%c0, %c0_0] : memref<8x128xf32, #tpu.memory_space<vmem>>, vector<8x128xf32>
    %c0_1 = arith.constant 0 : index
    %c0_2 = arith.constant 0 : index
    %1 = vector.load %arg2[%c0_1, %c0_2] : memref<128x128xf32, #tpu.memory_space<vmem>>, vector<128x128xf32>
    %cst = arith.constant dense<0.000000e+00> : vector<8x128xf32>
    %2 = tpu.matmul %0, %1, %cst {dimension_numbers = #tpu.dot_dimension_numbers<[1], [0], [0], [1], [0, 0, 1, 1], [], []>} : vector<8x128xf32>, vector<128x128xf32>, vector<8x128xf32> -> vector<8x128xf32>
    %c0_3 = arith.constant 0 : index
    %c0_4 = arith.constant 0 : index
    %3 = vector.load %arg3[%c0_3, %c0_4] : memref<1x128xf32, #tpu.memory_space<vmem>>, vector<1x128xf32>
    %4 = vector.broadcast %3 : vector<1x128xf32> to vector<8x128xf32>
    %5 = arith.addf %2, %4 : vector<8x128xf32>
    %cst_5 = arith.constant dense<0.000000e+00> : vector<8xf32>
    %6 = vector.multi_reduction <add>, %5, %cst_5 [1] : vector<8x128xf32> to vector<8xf32>
    %7 = vector.shape_cast %6 : vector<8xf32> to vector<8x1xf32>
    %cst_6 = arith.constant 5.000000e-02 : f32
    %8 = vector.broadcast %cst_6 : f32 to vector<8x1xf32>
    %9 = arith.mulf %7, %8 : vector<8x1xf32>
    %10 = vector.broadcast %9 : vector<8x1xf32> to vector<8x128xf32>
    %11 = arith.subf %5, %10 : vector<8x128xf32>
    %12 = arith.mulf %11, %11 : vector<8x128xf32>
    %cst_7 = arith.constant dense<0.000000e+00> : vector<8xf32>
    %13 = vector.multi_reduction <add>, %12, %cst_7 [1] : vector<8x128xf32> to vector<8xf32>
    %14 = vector.shape_cast %13 : vector<8xf32> to vector<8x1xf32>
    %15 = arith.mulf %9, %9 : vector<8x1xf32>
    %cst_8 = arith.constant 1.080000e+02 : f32
    %16 = vector.broadcast %cst_8 : f32 to vector<8x1xf32>
    %17 = arith.mulf %16, %15 : vector<8x1xf32>
    %18 = arith.subf %14, %17 : vector<8x1xf32>
    %cst_9 = arith.constant 5.000000e-02 : f32
    %19 = vector.broadcast %cst_9 : f32 to vector<8x1xf32>
    %20 = arith.mulf %18, %19 : vector<8x1xf32>
    %cst_10 = arith.constant 9.99999974E-6 : f32
    %21 = vector.broadcast %cst_10 : f32 to vector<8x1xf32>
    %22 = arith.addf %20, %21 : vector<8x1xf32>
    %23 = math.rsqrt %22 : vector<8x1xf32>
    %24 = vector.broadcast %23 : vector<8x1xf32> to vector<8x128xf32>
    %25 = arith.mulf %11, %24 : vector<8x128xf32>
    %cst_11 = arith.constant 0.000000e+00 : f32
    %26 = vector.broadcast %cst_11 : f32 to vector<8x128xf32>
    %27 = arith.maximumf %25, %26 : vector<8x128xf32>
    %c0_12 = arith.constant 0 : index
    %c0_13 = arith.constant 0 : index
    %28 = vector.load %arg4[%c0_12, %c0_13] : memref<128x128xf32, #tpu.memory_space<vmem>>, vector<128x128xf32>
    %cst_14 = arith.constant dense<0.000000e+00> : vector<8x128xf32>
    %29 = tpu.matmul %27, %28, %cst_14 {dimension_numbers = #tpu.dot_dimension_numbers<[1], [0], [0], [1], [0, 0, 1, 1], [], []>} : vector<8x128xf32>, vector<128x128xf32>, vector<8x128xf32> -> vector<8x128xf32>
    %c0_15 = arith.constant 0 : index
    %c0_16 = arith.constant 0 : index
    %30 = vector.load %arg5[%c0_15, %c0_16] : memref<1x128xf32, #tpu.memory_space<vmem>>, vector<1x128xf32>
    %31 = vector.broadcast %30 : vector<1x128xf32> to vector<8x128xf32>
    %32 = arith.addf %29, %31 : vector<8x128xf32>
    %c0_17 = arith.constant 0 : index
    %c0_18 = arith.constant 0 : index
    %33 = vector.load %arg6[%c0_17, %c0_18] : memref<8x128xf32, #tpu.memory_space<vmem>>, vector<8x128xf32>
    tpu.vector_store %arg6[%c0_17, %c0_18], %32 {strides = array<i32>} : memref<8x128xf32, #tpu.memory_space<vmem>>, vector<8x128xf32>,
    return
  }
  func.func @transform_0(%arg0: i32) -> (i32, i32) {
    %c0_i32 = arith.constant 0 : i32
    %c0_i32_0 = arith.constant 0 : i32
    return %arg0, %c0_i32 : i32, i32
  }
  func.func @transform_1(%arg0: i32) -> (i32, i32) {
    %c0_i32 = arith.constant 0 : i32
    %c0_i32_0 = arith.constant 0 : i32
    %c0_i32_1 = arith.constant 0 : i32
    return %c0_i32, %c0_i32_0 : i32, i32
  }
  func.func @transform_2(%arg0: i32) -> (i32, i32) {
    %c0_i32 = arith.constant 0 : i32
    %c0_i32_0 = arith.constant 0 : i32
    %c0_i32_1 = arith.constant 0 : i32
    return %c0_i32, %c0_i32_0 : i32, i32
  }
  func.func @transform_3(%arg0: i32) -> (i32, i32) {
    %c0_i32 = arith.constant 0 : i32
    %c0_i32_0 = arith.constant 0 : i32
    %c0_i32_1 = arith.constant 0 : i32
    return %c0_i32, %c0_i32_0 : i32, i32
  }
  func.func @transform_4(%arg0: i32) -> (i32, i32) {
    %c0_i32 = arith.constant 0 : i32
    %c0_i32_0 = arith.constant 0 : i32
    %c0_i32_1 = arith.constant 0 : i32
    return %c0_i32, %c0_i32_0 : i32, i32
  }
  func.func @transform_5(%arg0: i32) -> (i32, i32) {
    %c0_i32 = arith.constant 0 : i32
    %c0_i32_0 = arith.constant 0 : i32
    return %arg0, %c0_i32 : i32, i32
  }
}

</mosaic_0001>

<llo_original>
// kernel: tpu_custom_call.1
$region0: #{tpu_custom_call.1}
  #allocation0 [shape = 'u32[]', space=smem, size = 0x4, offset = 0x4, fixed_abs, tag = 'smem constant byte address 0x4 - core index']
  #allocation1 [shape = 'u32[144,128]{1,0:T(1,128)}', space=vmem, size = 0x12000, scoped, tag = 'internal scratch']
  %s0 = inlined_call_operand.hbm [shape: f32[16,128], index: 0, kind: input, shape index: {}]
  %s1 = inlined_call_operand.hbm [shape: f32[128,128], index: 1, kind: input, shape index: {}]
  %s2 = inlined_call_operand.vmem [shape: f32[1,128], index: 2, kind: input, shape index: {}]
  %s3 = inlined_call_operand.hbm [shape: f32[128,128], index: 3, kind: input, shape index: {}]
  %s4 = inlined_call_operand.vmem [shape: f32[1,128], index: 4, kind: input, shape index: {}]
  %s5 = inlined_call_operand.hbm [shape: f32[16,128], index: 5, kind: output, shape index: {}]
  %s6 = sld [smem:[#allocation0]]
  $region65: #{tpu_custom_call.1} parent=0
    _
  %s8 = ssub.s32 1, %s6
  %s9 = scalar_select 0, %s8, %s6
  $region1: #{tpu_custom_call.1} parent=0
    #allocation2 [shape = 'u8[8192]{0}', space=vmem, size = 0x2000, scoped, tag = 'input window, operand 0']
    #allocation3 [shape = 's32[2]{0}', space=sflag, size = 0x8, scoped, tag = 'scoped memory for tpu_custom_call.1']
    #allocation4 [shape = 's32[2]{0}', space=sflag, size = 0x8, scoped, tag = 'scoped memory for tpu_custom_call.1']
    #allocation5 [shape = 'u8[65536]{0}', space=vmem, size = 0x10000, scoped, tag = 'input window, operand 1, single buffered']
    #allocation6 [shape = 's32[1]{0}', space=sflag, size = 0x4, scoped, tag = 'scoped memory for tpu_custom_call.1']
    #allocation7 [shape = 'u8[65536]{0}', space=vmem, size = 0x10000, scoped, tag = 'input window, operand 3, single buffered']
    #allocation8 [shape = 'u8[8192]{0}', space=vmem, size = 0x2000, scoped, tag = 'output window, operand 0']
    %10 = vsyncpa [#allocation3], 0
    %s11 = scalar_lea.sflag [#allocation3], 1
    %12 = vsyncpa %s11, 0
    %13 = vsyncpa [#allocation6], 0
    %14 = vsyncpa [#allocation4], 0
    %s15 = scalar_lea.sflag [#allocation4], 1
    %16 = vsyncpa %s15, 0
    loop: start=0, step=1, limit=4
    $region2: #{tpu_custom_call.1} parent=1 // loop_pre_header
      _
    $region3: #{tpu_custom_call.1} parent=1 // loop_header
      %s18 = sphi 0, %s22
      %p19 = scmp.ge.s32.totalorder %s18, 4
      %s28 = sphi 0, %s30
      %s31 = sphi 0, %s28
      %s32 = sphi 0, %s31
      %s48 = sphi 0, %s32
      %s52 = sphi 0, %s52
      %s54 = sphi 0, %s52
      %s55 = sphi 0, %s54
      %s69 = sphi 0, %s55
      %s73 = sphi 0, %s73
      %s75 = sphi 0, %s73
      %s76 = sphi 0, %s75
      %s90 = sphi 0, %s76
      %s94 = sphi 0, %s94
      %s96 = sphi 0, %s94
      %s97 = sphi 0, %s96
      %s111 = sphi 0, %s97
      %s115 = sphi 0, %s115
      %s117 = sphi 0, %s115
      %s118 = sphi 0, %s117
      %s132 = sphi 0, %s118
      %s138 = sphi 0, %s140
      %s141 = sphi 0, %s138
      %s142 = sphi 0, %s141
      %s158 = sphi 0, %s142
    $region4: #{tpu_custom_call.1} parent=1 // loop_header_branch
      %21 = sbr.rel (%p19) target = $region8
    $region5: #{tpu_custom_call.1} parent=1 // loop_body
      %s23 = ssub.s32 %s18, 1
      %s24 = ssub.s32 %s18, 2
      %s25 = sadd.s32 %s18, 1
      %s26 = ssub.s32 %s18, %s25
      %p27 = scmp.eq.s32.totalorder %s26, 0
      %s29 = sadd.s32 %s28, 1
      %s30 = scalar_select %p27, %s28, %s29
      %p33 = pneg %p27
      %p34 = scmp.eq.s32.totalorder %s18, 1
      %p35 = por %p33, %p34
      %p36 = scmp.ne.s32.totalorder %s28, %s31
      %p37 = scmp.eq.s32.totalorder %s18, 0
      %p38 = por %p36, %p37
      %p39 = scmp.ne.s32.totalorder %s28, %s31
      %p40 = scmp.eq.s32.totalorder %s23, 1
      %p41 = por %p39, %p40
      %p42 = scmp.ne.s32.totalorder %s31, %s32
      %p43 = scmp.eq.s32.totalorder %s23, 0
      %p44 = por %p42, %p43
      %p45 = scmp.ne.s32.totalorder %s31, %s32
      %p46 = scmp.eq.s32.totalorder %s24, 1
      %p47 = por %p45, %p46
      %p49 = scmp.ne.s32.totalorder %s32, %s48
      %p50 = scmp.eq.s32.totalorder %s24, 0
      %p51 = por %p49, %p50
      %s53 = sadd.s32 %s52, 1
      %p56 = scmp.eq.s32.totalorder %s18, 1
      %p57 = scmp.ne.s32.totalorder %s52, %s54
      %p58 = scmp.eq.s32.totalorder %s18, 0
      %p59 = por %p57, %p58
      %p60 = scmp.ne.s32.totalorder %s52, %s54
      %p61 = scmp.eq.s32.totalorder %s23, 1
      %p62 = por %p60, %p61
      %p63 = scmp.ne.s32.totalorder %s54, %s55
      %p64 = scmp.eq.s32.totalorder %s23, 0
      %p65 = por %p63, %p64
      %p66 = scmp.ne.s32.totalorder %s54, %s55
      %p67 = scmp.eq.s32.totalorder %s24, 1
      %p68 = por %p66, %p67
      %p70 = scmp.ne.s32.totalorder %s55, %s69
      %p71 = scmp.eq.s32.totalorder %s24, 0
      %p72 = por %p70, %p71
      %s74 = sadd.s32 %s73, 1
      %p77 = scmp.eq.s32.totalorder %s18, 1
      %p78 = scmp.ne.s32.totalorder %s73, %s75
      %p79 = scmp.eq.s32.totalorder %s18, 0
      %p80 = por %p78, %p79
      %p81 = scmp.ne.s32.totalorder %s73, %s75
      %p82 = scmp.eq.s32.totalorder %s23, 1
      %p83 = por %p81, %p82
      %p84 = scmp.ne.s32.totalorder %s75, %s76
      %p85 = scmp.eq.s32.totalorder %s23, 0
      %p86 = por %p84, %p85
      %p87 = scmp.ne.s32.totalorder %s75, %s76
      %p88 = scmp.eq.s32.totalorder %s24, 1
      %p89 = por %p87, %p88
      %p91 = scmp.ne.s32.totalorder %s76, %s90
      %p92 = scmp.eq.s32.totalorder %s24, 0
      %p93 = por %p91, %p92
      %s95 = sadd.s32 %s94, 1
      %p98 = scmp.eq.s32.totalorder %s18, 1
      %p99 = scmp.ne.s32.totalorder %s94, %s96
      %p100 = scmp.eq.s32.totalorder %s18, 0
      %p101 = por %p99, %p100
      %p102 = scmp.ne.s32.totalorder %s94, %s96
      %p103 = scmp.eq.s32.totalorder %s23, 1
      %p104 = por %p102, %p103
      %p105 = scmp.ne.s32.totalorder %s96, %s97
      %p106 = scmp.eq.s32.totalorder %s23, 0
      %p107 = por %p105, %p106
      %p108 = scmp.ne.s32.totalorder %s96, %s97
      %p109 = scmp.eq.s32.totalorder %s24, 1
      %p110 = por %p108, %p109
      %p112 = scmp.ne.s32.totalorder %s97, %s111
      %p113 = scmp.eq.s32.totalorder %s24, 0
      %p114 = por %p112, %p113
      %s116 = sadd.s32 %s115, 1
      %p119 = scmp.eq.s32.totalorder %s18, 1
      %p120 = scmp.ne.s32.totalorder %s115, %s117
      %p121 = scmp.eq.s32.totalorder %s18, 0
      %p122 = por %p120, %p121
      %p123 = scmp.ne.s32.totalorder %s115, %s117
      %p124 = scmp.eq.s32.totalorder %s23, 1
      %p125 = por %p123, %p124
      %p126 = scmp.ne.s32.totalorder %s117, %s118
      %p127 = scmp.eq.s32.totalorder %s23, 0
      %p128 = por %p126, %p127
      %p129 = scmp.ne.s32.totalorder %s117, %s118
      %p130 = scmp.eq.s32.totalorder %s24, 1
      %p131 = por %p129, %p130
      %p133 = scmp.ne.s32.totalorder %s118, %s132
      %p134 = scmp.eq.s32.totalorder %s24, 0
      %p135 = por %p133, %p134
      %s136 = ssub.s32 %s18, %s25
      %p137 = scmp.eq.s32.totalorder %s136, 0
      %s139 = sadd.s32 %s138, 1
      %s140 = scalar_select %p137, %s138, %s139
      %p143 = pneg %p137
      %p144 = scmp.eq.s32.totalorder %s18, 1
      %p145 = por %p143, %p144
      %p146 = scmp.ne.s32.totalorder %s138, %s141
      %p147 = scmp.eq.s32.totalorder %s18, 0
      %p148 = por %p146, %p147
      %p149 = scmp.ne.s32.totalorder %s138, %s141
      %p150 = scmp.eq.s32.totalorder %s23, 1
      %p151 = por %p149, %p150
      %p152 = scmp.ne.s32.totalorder %s141, %s142
      %p153 = scmp.eq.s32.totalorder %s23, 0
      %p154 = por %p152, %p153
      %p155 = scmp.ne.s32.totalorder %s141, %s142
      %p156 = scmp.eq.s32.totalorder %s24, 1
      %p157 = por %p155, %p156
      %p159 = scmp.ne.s32.totalorder %s142, %s158
      %p160 = scmp.eq.s32.totalorder %s24, 0
      %p161 = por %p159, %p160
      %p162 = scmp.le.s32.totalorder 1, %s18
      %p163 = scmp.lt.s32.totalorder %s18, 3
      %p164 = pnand %p162, %p163
      %p165 = pneg %p164
      // Predicated region
      $region9: #{tpu_custom_call.1} parent=5 // pred_check
        _
      $region10: #{tpu_custom_call.1} parent=5 // pred_check_branch
        %167 = sbr.rel (%p164) target = $region12
      $region11: #{tpu_custom_call.1} parent=5 // pred_region
        %s168 = ssub.s32 %s18, 1
        // Predicated region
        $region13: #{tpu_custom_call.1} parent=11 // pred_check
          %p169 = pneg %p65
        $region14: #{tpu_custom_call.1} parent=11 // pred_check_branch
          %171 = sbr.rel (%p169) target = $region16
        $region15: #{tpu_custom_call.1} parent=11 // pred_region
          %s173 = ssub.s32 2048, 2048
          %174 = vsyncadd [#allocation6], %s173
          %s175 = sshll.u32 [#allocation5], 4
          %s176 = int_to_ptr.vmem [resolvable:$true] %s175
          %181 = dma.hbm_to_vmem [thread:$0]  %s1, 2048, %s176, [#allocation6], 128, 128, 8
        $region16: #{tpu_custom_call.1} parent=11 // pred_fallthru
          _
        // Predicated region
        $region17: #{tpu_custom_call.1} parent=11 // pred_check
          %p182 = pneg %p86
        $region18: #{tpu_custom_call.1} parent=11 // pred_check_branch
          %184 = sbr.rel (%p182) target = $region20
        $region19: #{tpu_custom_call.1} parent=11 // pred_region
          _
        $region20: #{tpu_custom_call.1} parent=11 // pred_fallthru
          _
        // Predicated region
        $region21: #{tpu_custom_call.1} parent=11 // pred_check
          %p185 = pneg %p107
        $region22: #{tpu_custom_call.1} parent=11 // pred_check_branch
          %187 = sbr.rel (%p185) target = $region24
        $region23: #{tpu_custom_call.1} parent=11 // pred_region
          %s189 = ssub.s32 2048, 2048
          %190 = vsyncadd [#allocation6], %s189
          %s191 = sshll.u32 [#allocation7], 4
          %s192 = int_to_ptr.vmem [resolvable:$true] %s191
          %197 = dma.hbm_to_vmem [thread:$0]  %s3, 2048, %s192, [#allocation6], 128, 128, 8
        $region24: #{tpu_custom_call.1} parent=11 // pred_fallthru
          _
        // Predicated region
        $region25: #{tpu_custom_call.1} parent=11 // pred_check
          %p198 = pneg %p128
        $region26: #{tpu_custom_call.1} parent=11 // pred_check_branch
          %200 = sbr.rel (%p198) target = $region28
        $region27: #{tpu_custom_call.1} parent=11 // pred_region
          _
        $region28: #{tpu_custom_call.1} parent=11 // pred_fallthru
          _
      $region12: #{tpu_custom_call.1} parent=5 // pred_fallthru
        _
      %p201 = scmp.lt.s32.totalorder %s18, 2
      // Predicated region
      $region29: #{tpu_custom_call.1} parent=5 // pred_check
        %p202 = pneg %p201
      $region30: #{tpu_custom_call.1} parent=5 // pred_check_branch
        %204 = sbr.rel (%p202) target = $region32
      $region31: #{tpu_custom_call.1} parent=5 // pred_region
        // Predicated region
        $region33: #{tpu_custom_call.1} parent=31 // pred_check
          %p205 = pneg %p38
        $region34: #{tpu_custom_call.1} parent=31 // pred_check_branch
          %207 = sbr.rel (%p205) target = $region36
        $region35: #{tpu_custom_call.1} parent=31 // pred_region
          %s208 = sand.u32 %s28, 1
          %s209 = scalar_lea.sflag [#allocation3], %s208
          %s210 = sand.u32 %s28, 1
          %s211 = smul.addr %s210, 8
          %s212 = scalar_lea.vmem [#allocation2], %s211
          %s214 = ssub.s32 128, 128
          %215 = vsyncadd %s209, %s214
          %s216 = smul.addr %s18, 128
          %s217 = scalar_lea.hbm %s0, %s216
          %s219 = sshll.u32 %s212, 4
          %s220 = int_to_ptr.vmem [resolvable:$true] %s219
          %222 = dma.hbm_to_vmem [thread:$0]  %s217, 128, %s220, %s209
        $region36: #{tpu_custom_call.1} parent=31 // pred_fallthru
          _
      $region32: #{tpu_custom_call.1} parent=5 // pred_fallthru
        _
      %p223 = scmp.le.s32.totalorder 1, %s18
      %p224 = scmp.lt.s32.totalorder %s18, 3
      %p225 = pnand %p223, %p224
      %p226 = pneg %p225
      // Predicated region
      $region37: #{tpu_custom_call.1} parent=5 // pred_check
        _
      $region38: #{tpu_custom_call.1} parent=5 // pred_check_branch
        %228 = sbr.rel (%p225) target = $region40
      $region39: #{tpu_custom_call.1} parent=5 // pred_region
        %s229 = ssub.s32 %s18, 1
        %s230 = sand.u32 %s31, 1
        %s231 = scalar_lea.sflag [#allocation3], %s230
        %s232 = sand.u32 %s31, 1
        %s233 = smul.addr %s232, 8
        %s234 = scalar_lea.vmem [#allocation2], %s233
        // Predicated region
        $region41: #{tpu_custom_call.1} parent=39 // pred_check
          %p235 = pneg %p44
        $region42: #{tpu_custom_call.1} parent=39 // pred_check_branch
          %237 = sbr.rel (%p235) target = $region44
        $region43: #{tpu_custom_call.1} parent=39 // pred_region
          %238 = dma.done %s231, 128
        $region44: #{tpu_custom_call.1} parent=39 // pred_fallthru
          _
        // Predicated region
        $region45: #{tpu_custom_call.1} parent=39 // pred_check
          %p239 = pneg %p65
        $region46: #{tpu_custom_call.1} parent=39 // pred_check_branch
          %241 = sbr.rel (%p239) target = $region48
        $region47: #{tpu_custom_call.1} parent=39 // pred_region
          %242 = dma.done [#allocation6], 2048
        $region48: #{tpu_custom_call.1} parent=39 // pred_fallthru
          _
        // Predicated region
        $region49: #{tpu_custom_call.1} parent=39 // pred_check
          %p243 = pneg %p107
        $region50: #{tpu_custom_call.1} parent=39 // pred_check_branch
          %245 = sbr.rel (%p243) target = $region52
        $region51: #{tpu_custom_call.1} parent=39 // pred_region
          %246 = dma.done [#allocation6], 2048
        $region52: #{tpu_custom_call.1} parent=39 // pred_fallthru
          _
        %s247 = sand.u32 %s31, 1
        %s248 = scalar_lea.sflag [#allocation3], %s247
        %s249 = sand.u32 %s31, 1
        %s250 = smul.addr %s249, 8
        %s251 = scalar_lea.vmem [#allocation2], %s250
        %p252 = pneg %p44
        %p253 = pneg %p41
        %p254 = pneg %p65
        %p255 = pneg %p62
        %p256 = pneg %p86
        %p257 = pneg %p83
        %p258 = pneg %p107
        %p259 = pneg %p104
        %p260 = pneg %p128
        %p261 = pneg %p125
        %p262 = pneg %p154
        %p263 = pneg %p151
        %s264 = sand.u32 %s141, 1
        %s265 = scalar_lea.sflag [#allocation4], %s264
        %s266 = sand.u32 %s141, 1
        %s267 = smul.addr %s266, 8
        %s268 = scalar_lea.vmem [#allocation8], %s267
        %v269 = vld [vmem:[%s234] sm:$0xff]
        %v270 = vld [vmem:[#allocation5] sm:$0xff]
        %v271 = vld [vmem:[#allocation5 + $0x8] sm:$0xff]
        %v272 = vld [vmem:[#allocation5 + $0x10] sm:$0xff]
        %v273 = vld [vmem:[#allocation5 + $0x18] sm:$0xff]
        %v274 = vld [vmem:[#allocation5 + $0x20] sm:$0xff]
        %v275 = vld [vmem:[#allocation5 + $0x28] sm:$0xff]
        %v276 = vld [vmem:[#allocation5 + $0x30] sm:$0xff]
        %v277 = vld [vmem:[#allocation5 + $0x38] sm:$0xff]
        %v278 = vld [vmem:[#allocation5 + $0x40] sm:$0xff]
        %v279 = vld [vmem:[#allocation5 + $0x48] sm:$0xff]
        %v280 = vld [vmem:[#allocation5 + $0x50] sm:$0xff]
        %v281 = vld [vmem:[#allocation5 + $0x58] sm:$0xff]
        %v282 = vld [vmem:[#allocation5 + $0x60] sm:$0xff]
        %v283 = vld [vmem:[#allocation5 + $0x68] sm:$0xff]
        %v284 = vld [vmem:[#allocation5 + $0x70] sm:$0xff]
        %v285 = vld [vmem:[#allocation5 + $0x78] sm:$0xff]
        %v286 = vld [vmem:[%s2] sm:$0x1]
        %v288 = vlaneseq
        %v289 = vshrl.u32 %v288, 7
        %v290 = vsub.s32 0, %v289
        %v291 = vrot.slane %v286, %v290
        %293 = vmatprep.subr.mxu0 0.0
        %294 = vmatpush1.msra.mxu0 %v270
        %295 = vmatprep.subr.mxu0 0.0
        %296 = vmatpush1.msra.mxu0 %v271
        %297 = vmatprep.subr.mxu0 0.0
        %298 = vmatpush1.msra.mxu0 %v272
        %299 = vmatprep.subr.mxu0 0.0
        %300 = vmatpush1.msra.mxu0 %v273
        %301 = vmatprep.subr.mxu0 0.0
        %302 = vmatpush1.msra.mxu0 %v274
        %303 = vmatprep.subr.mxu0 0.0
        %304 = vmatpush1.msra.mxu0 %v275
        %305 = vmatprep.subr.mxu0 0.0
        %306 = vmatpush1.msra.mxu0 %v276
        %307 = vmatprep.subr.mxu0 0.0
        %308 = vmatpush1.msra.mxu0 %v277
        %309 = vmatprep.subr.mxu0 0.0
        %310 = vmatpush1.msra.mxu0 %v278
        %311 = vmatprep.subr.mxu0 0.0
        %312 = vmatpush1.msra.mxu0 %v279
        %313 = vmatprep.subr.mxu0 0.0
        %314 = vmatpush1.msra.mxu0 %v280
        %315 = vmatprep.subr.mxu0 0.0
        %316 = vmatpush1.msra.mxu0 %v281
        %317 = vmatprep.subr.mxu0 0.0
        %318 = vmatpush1.msra.mxu0 %v282
        %319 = vmatprep.subr.mxu0 0.0
        %320 = vmatpush1.msra.mxu0 %v283
        %321 = vmatprep.subr.mxu0 0.0
        %322 = vmatpush1.msra.mxu0 %v284
        %323 = vmatprep.subr.mxu0 0.0
        %324 = vmatpush1.msra.mxu0 %v285
        %325 = vmatprep.subr.mxu0 0.0
        %326 = vmatpush1.msra.mxu0 0.0
        %327 = vmatprep.subr.mxu0 0.0
        %328 = vmatpush1.msra.mxu0 0.0
        %329 = vmatprep.subr.mxu0 0.0
        %330 = vmatpush1.msra.mxu0 0.0
        %331 = vmatprep.subr.mxu0 0.0
        %332 = vmatpush1.msra.mxu0 0.0
        %333 = vmatprep.subr.mxu0 0.0
        %334 = vmatpush1.msra.mxu0 0.0
        %335 = vmatprep.subr.mxu0 0.0
        %336 = vmatpush1.msra.mxu0 0.0
        %337 = vmatprep.subr.mxu0 0.0
        %338 = vmatpush1.msra.mxu0 0.0
        %339 = vmatprep.subr.mxu0 0.0
        %340 = vmatpush1.msra.mxu0 0.0
        %341 = vmatprep.subr.mxu0 0.0
        %342 = vmatpush1.msra.mxu0 0.0
        %343 = vmatprep.subr.mxu0 0.0
        %344 = vmatpush1.msra.mxu0 0.0
        %345 = vmatprep.subr.mxu0 0.0
        %346 = vmatpush1.msra.mxu0 0.0
        %347 = vmatprep.subr.mxu0 0.0
        %348 = vmatpush1.msra.mxu0 0.0
        %349 = vmatprep.subr.mxu0 0.0
        %350 = vmatpush1.msra.mxu0 0.0
        %351 = vmatprep.subr.mxu0 0.0
        %352 = vmatpush1.msra.mxu0 0.0
        %353 = vmatprep.subr.mxu0 0.0
        %354 = vmatpush1.msra.mxu0 0.0
        %355 = vmatprep.subr.mxu0 0.0
        %356 = vmatpush1.msra.mxu0 0.0
        %357 = vmatprep.mubr.f32.mxu0 0.0
        %358 = vmatmul.mubr.f32.gmra.mrb[0].mxu0 %v269
        %v359 = vpop.f32.mrb[0].mxu0
        %v360 = vadd.f32 %v291, %v359
        %v361 = vpop.f32.mrb[0].mxu0
        %362 = vdwg.mxu0
        %363 = vadd.xlane.f32.xlu0 %v360
        %v364 = vpop.xlane.xlu0 %363
        %v365 = vmul.f32 %v364, 0.05
        %v366 = vsub.f32 %v360, %v365
        %v367 = vmul.f32 %v366, %v366
        %368 = vadd.xlane.f32.xlu0 %v367
        %v369 = vpop.xlane.xlu0 %368
        %v370 = vmul.f32 %v365, %v365
        %v371 = vmul.f32 %v370, 108.0
        %v372 = vsub.f32 %v369, %v371
        %v373 = vmul.f32 %v372, 0.05
        %v374 = vadd.f32 %v373, 1e-05
        %v375 = vrsqrt.pop %v374
        %v376 = vmul.f32 %v366, %v375
        %v377 = vmax.f32 %v376, 0.0
        %v378 = vld [vmem:[#allocation7] sm:$0xff]
        %v379 = vld [vmem:[#allocation7 + $0x8] sm:$0xff]
        %v380 = vld [vmem:[#allocation7 + $0x10] sm:$0xff]
        %v381 = vld [vmem:[#allocation7 + $0x18] sm:$0xff]
        %v382 = vld [vmem:[#allocation7 + $0x20] sm:$0xff]
        %v383 = vld [vmem:[#allocation7 + $0x28] sm:$0xff]
        %v384 = vld [vmem:[#allocation7 + $0x30] sm:$0xff]
        %v385 = vld [vmem:[#allocation7 + $0x38] sm:$0xff]
        %v386 = vld [vmem:[#allocation7 + $0x40] sm:$0xff]
        %v387 = vld [vmem:[#allocation7 + $0x48] sm:$0xff]
        %v388 = vld [vmem:[#allocation7 + $0x50] sm:$0xff]
        %v389 = vld [vmem:[#allocation7 + $0x58] sm:$0xff]
        %v390 = vld [vmem:[#allocation7 + $0x60] sm:$0xff]
        %v391 = vld [vmem:[#allocation7 + $0x68] sm:$0xff]
        %v392 = vld [vmem:[#allocation7 + $0x70] sm:$0xff]
        %v393 = vld [vmem:[#allocation7 + $0x78] sm:$0xff]
        %v394 = vld [vmem:[%s4] sm:$0x1]
        %v396 = vlaneseq
        %v397 = vshrl.u32 %v396, 7
        %v398 = vsub.s32 0, %v397
        %v399 = vrot.slane %v394, %v398
        %401 = vmatprep.subr.mxu0 0.0
        %402 = vmatpush1.msra.mxu0 %v378
        %403 = vmatprep.subr.mxu0 0.0
        %404 = vmatpush1.msra.mxu0 %v379
        %405 = vmatprep.subr.mxu0 0.0
        %406 = vmatpush1.msra.mxu0 %v380
        %407 = vmatprep.subr.mxu0 0.0
        %408 = vmatpush1.msra.mxu0 %v381
        %409 = vmatprep.subr.mxu0 0.0
        %410 = vmatpush1.msra.mxu0 %v382
        %411 = vmatprep.subr.mxu0 0.0
        %412 = vmatpush1.msra.mxu0 %v383
        %413 = vmatprep.subr.mxu0 0.0
        %414 = vmatpush1.msra.mxu0 %v384
        %415 = vmatprep.subr.mxu0 0.0
        %416 = vmatpush1.msra.mxu0 %v385
        %417 = vmatprep.subr.mxu0 0.0
        %418 = vmatpush1.msra.mxu0 %v386
        %419 = vmatprep.subr.mxu0 0.0
        %420 = vmatpush1.msra.mxu0 %v387
        %421 = vmatprep.subr.mxu0 0.0
        %422 = vmatpush1.msra.mxu0 %v388
        %423 = vmatprep.subr.mxu0 0.0
        %424 = vmatpush1.msra.mxu0 %v389
        %425 = vmatprep.subr.mxu0 0.0
        %426 = vmatpush1.msra.mxu0 %v390
        %427 = vmatprep.subr.mxu0 0.0
        %428 = vmatpush1.msra.mxu0 %v391
        %429 = vmatprep.subr.mxu0 0.0
        %430 = vmatpush1.msra.mxu0 %v392
        %431 = vmatprep.subr.mxu0 0.0
        %432 = vmatpush1.msra.mxu0 %v393
        %433 = vmatprep.subr.mxu0 0.0
        %434 = vmatpush1.msra.mxu0 0.0
        %435 = vmatprep.subr.mxu0 0.0
        %436 = vmatpush1.msra.mxu0 0.0
        %437 = vmatprep.subr.mxu0 0.0
        %438 = vmatpush1.msra.mxu0 0.0
        %439 = vmatprep.subr.mxu0 0.0
        %440 = vmatpush1.msra.mxu0 0.0
        %441 = vmatprep.subr.mxu0 0.0
        %442 = vmatpush1.msra.mxu0 0.0
        %443 = vmatprep.subr.mxu0 0.0
        %444 = vmatpush1.msra.mxu0 0.0
        %445 = vmatprep.subr.mxu0 0.0
        %446 = vmatpush1.msra.mxu0 0.0
        %447 = vmatprep.subr.mxu0 0.0
        %448 = vmatpush1.msra.mxu0 0.0
        %449 = vmatprep.subr.mxu0 0.0
        %450 = vmatpush1.msra.mxu0 0.0
        %451 = vmatprep.subr.mxu0 0.0
        %452 = vmatpush1.msra.mxu0 0.0
        %453 = vmatprep.subr.mxu0 0.0
        %454 = vmatpush1.msra.mxu0 0.0
        %455 = vmatprep.subr.mxu0 0.0
        %456 = vmatpush1.msra.mxu0 0.0
        %457 = vmatprep.subr.mxu0 0.0
        %458 = vmatpush1.msra.mxu0 0.0
        %459 = vmatprep.subr.mxu0 0.0
        %460 = vmatpush1.msra.mxu0 0.0
        %461 = vmatprep.subr.mxu0 0.0
        %462 = vmatpush1.msra.mxu0 0.0
        %463 = vmatprep.subr.mxu0 0.0
        %464 = vmatpush1.msra.mxu0 0.0
        %465 = vmatprep.mubr.f32.mxu0 0.0
        %466 = vmatmul.mubr.f32.gmra.mrb[0].mxu0 %v377
        %v467 = vpop.f32.mrb[0].mxu0
        %v468 = vadd.f32 %v399, %v467
        %v469 = vpop.f32.mrb[0].mxu0
        %470 = vdwg.mxu0
        %471 = vst [vmem:[%s268] sm:$0xff] %v468
        %s472 = sand.u32 %s141, 1
        %s473 = scalar_lea.sflag [#allocation4], %s472
        %s474 = sand.u32 %s141, 1
        %s475 = smul.addr %s474, 8
        %s476 = scalar_lea.vmem [#allocation8], %s475
        // Predicated region
        $region53: #{tpu_custom_call.1} parent=39 // pred_check
          %p477 = pneg %p151
        $region54: #{tpu_custom_call.1} parent=39 // pred_check_branch
          %479 = sbr.rel (%p477) target = $region56
        $region55: #{tpu_custom_call.1} parent=39 // pred_region
          %s481 = ssub.s32 128, 128
          %482 = vsyncadd %s473, %s481
          %s483 = smul.addr %s23, 128
          %s484 = scalar_lea.hbm %s5, %s483
          %s486 = sshll.u32 %s476, 4
          %s487 = int_to_ptr.vmem [resolvable:$true] %s486
          %489 = dma.vmem_to_hbm [thread:$0]  %s487, 128, %s484, %s473
        $region56: #{tpu_custom_call.1} parent=39 // pred_fallthru
          _
      $region40: #{tpu_custom_call.1} parent=5 // pred_fallthru
        _
      %p490 = scmp.le.s32.totalorder 2, %s18
      // Predicated region
      $region57: #{tpu_custom_call.1} parent=5 // pred_check
        %p491 = pneg %p490
      $region58: #{tpu_custom_call.1} parent=5 // pred_check_branch
        %493 = sbr.rel (%p491) target = $region60
      $region59: #{tpu_custom_call.1} parent=5 // pred_region
        %s494 = ssub.s32 %s18, 2
        // Predicated region
        $region61: #{tpu_custom_call.1} parent=59 // pred_check
          %p495 = pneg %p157
        $region62: #{tpu_custom_call.1} parent=59 // pred_check_branch
          %497 = sbr.rel (%p495) target = $region64
        $region63: #{tpu_custom_call.1} parent=59 // pred_region
          %s498 = sand.u32 %s142, 1
          %s499 = scalar_lea.sflag [#allocation4], %s498
          %s500 = sand.u32 %s142, 1
          %s501 = smul.addr %s500, 8
          %s502 = scalar_lea.vmem [#allocation8], %s501
          %503 = dma.done %s499, 128
        $region64: #{tpu_custom_call.1} parent=59 // pred_fallthru
          _
      $region60: #{tpu_custom_call.1} parent=5 // pred_fallthru
        _
    $region6: #{tpu_custom_call.1} parent=1 // loop_footer
      %s22 = sadd.s32 1, %s18
    $region7: #{tpu_custom_call.1} parent=1 // loop_footer_branch
      %17 = sbr.rel target = $region3
    $region8: #{tpu_custom_call.1} parent=1 // loop_exit
      _
    %504 = vsyncpa [#allocation3], 1
    %s505 = scalar_lea.sflag [#allocation3], 1
    %506 = vsyncpa %s505, 1
    %507 = vsyncpa [#allocation6], 1
    %508 = vsyncpa [#allocation4], 1
    %s509 = scalar_lea.sflag [#allocation4], 1
    %510 = vsyncpa %s509, 1

</llo_original>
